<compile_context>
chip_gen: v5e
topology: v5e:2x2
jax: 0.10.0
libtpu: 0.0.40
codegen_flags: <defaults>
</compile_context>

<pallas_src>
import jax
import jax.numpy as jnp
from jax.experimental import pallas as pl
from jax.experimental.pallas import tpu as pltpu

IN_FEATURES = 20
HIDDEN = 256
OUT_FEATURES = 10
MAX_TILE_B = 512  # rows per grid step; multiple of 8, comfortably within VMEM on v5e/v6e/v7x


def mlp_kernel(x_ref, w1_ref, b1_ref, w2_ref, b2_ref, o_ref):
    # hidden = relu(X @ W1 + b1); bf16 operands on the MXU, f32 accumulation.
    h = jnp.dot(x_ref[...], w1_ref[...], preferred_element_type=jnp.float32)
    h = jnp.maximum(h + b1_ref[...], 0.0)          # bias + ReLU in f32 (VPU)
    # out = hidden @ W2 + b2; cast activations back to bf16 for the MXU.
    o = jnp.dot(h.astype(jnp.bfloat16), w2_ref[...],
                preferred_element_type=jnp.float32)
    o_ref[...] = (o + b2_ref[...]).astype(o_ref.dtype)


def _round_up(n, m):
    return ((n + m - 1) // m) * m


def mlp_forward(x, w1, b1, w2, b2, *, tile_b=MAX_TILE_B):
    """x: (B, 20); w1: (20, 256); b1: (256,); w2: (256, 10); b2: (10,)."""
    B = x.shape[0]
    out_dtype = x.dtype

    # Batch tile: a multiple of 8, no larger than the (padded) batch itself.
    padded_b = _round_up(B, 8)
    tile_b = min(tile_b, padded_b)
    padded_b = _round_up(padded_b, tile_b)
    if padded_b != B:
        x = jnp.pad(x, ((0, padded_b - B), (0, 0)))

    # bf16 operands for the MXU; biases stay f32 (bias add / ReLU done in f32).
    x_bf = x.astype(jnp.bfloat16)
    w1_bf = w1.astype(jnp.bfloat16)
    w2_bf = w2.astype(jnp.bfloat16)
    b1_2d = b1.reshape(1, HIDDEN).astype(jnp.float32)
    b2_2d = b2.reshape(1, OUT_FEATURES).astype(jnp.float32)

    grid = (padded_b // tile_b,)

    flops = 2 * padded_b * (IN_FEATURES * HIDDEN + HIDDEN * OUT_FEATURES)
    bytes_accessed = (
        x_bf.size * 2 + w1_bf.size * 2 + w2_bf.size * 2
        + b1_2d.size * 4 + b2_2d.size * 4
        + padded_b * OUT_FEATURES * jnp.dtype(out_dtype).itemsize
    )

    out = pl.pallas_call(
        mlp_kernel,
        out_shape=jax.ShapeDtypeStruct((padded_b, OUT_FEATURES), out_dtype),
        grid=grid,
        in_specs=[
            # Batch-tiled input: pipelined DMA, one tile per grid step.
            pl.BlockSpec((tile_b, IN_FEATURES), lambda i: (i, 0)),
            # Weights & biases: constant index_map -> fetched once, VMEM-resident.
            pl.BlockSpec((IN_FEATURES, HIDDEN), lambda i: (0, 0)),
            pl.BlockSpec((1, HIDDEN), lambda i: (0, 0)),
            pl.BlockSpec((HIDDEN, OUT_FEATURES), lambda i: (0, 0)),
            pl.BlockSpec((1, OUT_FEATURES), lambda i: (0, 0)),
        ],
        out_specs=pl.BlockSpec((tile_b, OUT_FEATURES), lambda i: (i, 0)),
        compiler_params=pltpu.CompilerParams(
            dimension_semantics=("parallel",),  # megacore-shard batch tiles on v7x
        ),
        cost_estimate=pl.CostEstimate(
            flops=flops, bytes_accessed=bytes_accessed, transcendentals=0),
    )(x_bf, w1_bf, b1_2d, w2_bf, b2_2d)

    return out[:B]


def init_params(key):
    """Deterministic init mimicking nn.Linear's uniform(-1/sqrt(fan_in), 1/sqrt(fan_in))."""
    k1, k2, k3, k4 = jax.random.split(key, 4)
    bound1 = 1.0 / jnp.sqrt(IN_FEATURES)
    bound2 = 1.0 / jnp.sqrt(HIDDEN)
    # Stored already transposed relative to PyTorch: (in, out) instead of (out, in).
    w1 = jax.random.uniform(k1, (IN_FEATURES, HIDDEN), jnp.float32, -bound1, bound1)
    b1 = jax.random.uniform(k2, (HIDDEN,), jnp.float32, -bound1, bound1)
    w2 = jax.random.uniform(k3, (HIDDEN, OUT_FEATURES), jnp.float32, -bound2, bound2)
    b2 = jax.random.uniform(k4, (OUT_FEATURES,), jnp.float32, -bound2, bound2)
    return w1, b1, w2, b2


if __name__ == "__main__":
    key = jax.random.PRNGKey(0)
    kx, kp = jax.random.split(key)

    batch = 8
    x = jax.random.normal(kx, (batch, IN_FEATURES), jnp.float32)
    w1, b1, w2, b2 = init_params(kp)

    out = mlp_forward(x, w1, b1, w2, b2)
    jax.block_until_ready(out)
    assert out.shape == (batch, OUT_FEATURES)

    # Pure-JAX f32 reference; loose tolerance because matmul operands are bf16.
    ref = jnp.maximum(x @ w1 + b1, 0.0) @ w2 + b2
    assert jnp.allclose(out, ref, atol=5e-2, rtol=5e-2), "mismatch vs reference"

    print("KERNEL_OK")
</pallas_src>

<mosaic_0001>
module attributes {stable_mosaic.version = 11 : i64} {
  func.func @mlp_kernel(%arg0: i32, %arg1: memref<8x20xbf16, #tpu.memory_space<vmem>>, %arg2: memref<20x256xbf16, #tpu.memory_space<vmem>>, %arg3: memref<1x256xf32, #tpu.memory_space<vmem>>, %arg4: memref<256x10xbf16, #tpu.memory_space<vmem>>, %arg5: memref<1x10xf32, #tpu.memory_space<vmem>>, %arg6: memref<8x10xf32, #tpu.memory_space<vmem>>) attributes {dimension_semantics = [#tpu.dimension_semantics<parallel>], iteration_bounds = array<i64: 1>, scalar_prefetch = 0 : i64, scratch_operands = 0 : i64, tpu.core_type = #tpu.core_type<tc>, window_params = [{transform_indices = @transform_0, window_bounds = array<i64: 8, 20>}, {pipeline_mode = #tpu.pipeline_mode<synchronous>, transform_indices = @transform_1, window_bounds = array<i64: 20, 256>}, {pipeline_mode = #tpu.pipeline_mode<synchronous>, transform_indices = @transform_2, window_bounds = array<i64: 1, 256>}, {pipeline_mode = #tpu.pipeline_mode<synchronous>, transform_indices = @transform_3, window_bounds = array<i64: 256, 10>}, {pipeline_mode = #tpu.pipeline_mode<synchronous>, transform_indices = @transform_4, window_bounds = array<i64: 1, 10>}, {transform_indices = @transform_5, window_bounds = array<i64: 8, 10>}]} {
    %c0 = arith.constant 0 : index
    %c0_0 = arith.constant 0 : index
    %0 = vector.load %arg1[%c0, %c0_0] : memref<8x20xbf16, #tpu.memory_space<vmem>>, vector<8x20xbf16>
    %c0_1 = arith.constant 0 : index
    %c0_2 = arith.constant 0 : index
    %1 = vector.load %arg2[%c0_1, %c0_2] : memref<20x256xbf16, #tpu.memory_space<vmem>>, vector<20x256xbf16>
    %cst = arith.constant dense<0.000000e+00> : vector<8x256xf32>
    %2 = tpu.matmul %0, %1, %cst {dimension_numbers = #tpu.dot_dimension_numbers<[1], [0], [0], [1], [0, 0, 1, 1], [], []>} : vector<8x20xbf16>, vector<20x256xbf16>, vector<8x256xf32> -> vector<8x256xf32>
    %c0_3 = arith.constant 0 : index
    %c0_4 = arith.constant 0 : index
    %3 = vector.load %arg3[%c0_3, %c0_4] : memref<1x256xf32, #tpu.memory_space<vmem>>, vector<1x256xf32>
    %4 = vector.broadcast %3 : vector<1x256xf32> to vector<8x256xf32>
    %5 = arith.addf %2, %4 : vector<8x256xf32>
    %cst_5 = arith.constant 0.000000e+00 : f32
    %6 = vector.broadcast %cst_5 : f32 to vector<8x256xf32>
    %7 = arith.maximumf %5, %6 : vector<8x256xf32>
    %8 = arith.truncf %7 : vector<8x256xf32> to vector<8x256xbf16>
    %c0_6 = arith.constant 0 : index
    %c0_7 = arith.constant 0 : index
    %9 = vector.load %arg4[%c0_6, %c0_7] : memref<256x10xbf16, #tpu.memory_space<vmem>>, vector<256x10xbf16>
    %cst_8 = arith.constant dense<0.000000e+00> : vector<8x10xf32>
    %10 = tpu.matmul %8, %9, %cst_8 {dimension_numbers = #tpu.dot_dimension_numbers<[1], [0], [0], [1], [0, 0, 1, 1], [], []>} : vector<8x256xbf16>, vector<256x10xbf16>, vector<8x10xf32> -> vector<8x10xf32>
    %c0_9 = arith.constant 0 : index
    %c0_10 = arith.constant 0 : index
    %11 = vector.load %arg5[%c0_9, %c0_10] : memref<1x10xf32, #tpu.memory_space<vmem>>, vector<1x10xf32>
    %12 = vector.broadcast %11 : vector<1x10xf32> to vector<8x10xf32>
    %13 = arith.addf %10, %12 : vector<8x10xf32>
    %c0_11 = arith.constant 0 : index
    %c0_12 = arith.constant 0 : index
    %14 = vector.load %arg6[%c0_11, %c0_12] : memref<8x10xf32, #tpu.memory_space<vmem>>, vector<8x10xf32>
    tpu.vector_store %arg6[%c0_11, %c0_12], %13 {strides = array<i32>} : memref<8x10xf32, #tpu.memory_space<vmem>>, vector<8x10xf32>,
    return
  }
  func.func @transform_0(%arg0: i32) -> (i32, i32) {
    %c0_i32 = arith.constant 0 : i32
    %c0_i32_0 = arith.constant 0 : i32
    return %arg0, %c0_i32 : i32, i32
  }
  func.func @transform_1(%arg0: i32) -> (i32, i32) {
    %c0_i32 = arith.constant 0 : i32
    %c0_i32_0 = arith.constant 0 : i32
    %c0_i32_1 = arith.constant 0 : i32
    return %c0_i32, %c0_i32_0 : i32, i32
  }
  func.func @transform_2(%arg0: i32) -> (i32, i32) {
    %c0_i32 = arith.constant 0 : i32
    %c0_i32_0 = arith.constant 0 : i32
    %c0_i32_1 = arith.constant 0 : i32
    return %c0_i32, %c0_i32_0 : i32, i32
  }
  func.func @transform_3(%arg0: i32) -> (i32, i32) {
    %c0_i32 = arith.constant 0 : i32
    %c0_i32_0 = arith.constant 0 : i32
    %c0_i32_1 = arith.constant 0 : i32
    return %c0_i32, %c0_i32_0 : i32, i32
  }
  func.func @transform_4(%arg0: i32) -> (i32, i32) {
    %c0_i32 = arith.constant 0 : i32
    %c0_i32_0 = arith.constant 0 : i32
    %c0_i32_1 = arith.constant 0 : i32
    return %c0_i32, %c0_i32_0 : i32, i32
  }
  func.func @transform_5(%arg0: i32) -> (i32, i32) {
    %c0_i32 = arith.constant 0 : i32
    %c0_i32_0 = arith.constant 0 : i32
    return %arg0, %c0_i32 : i32, i32
  }
}

</mosaic_0001>

<llo_original>
// kernel: tpu_custom_call.1
$region0: #{tpu_custom_call.1}
  #allocation0 [shape = 'u32[]', space=smem, size = 0x4, offset = 0x4, fixed_abs, tag = 'smem constant byte address 0x4 - core index']
  #allocation1 [shape = 'u32[72,128]{1,0:T(1,128)}', space=vmem, size = 0x9000, scoped, tag = 'internal scratch']
  %s0 = inlined_call_operand.vmem [shape: bf16[8,20], index: 0, kind: input, shape index: {}]
  %s1 = inlined_call_operand.vmem [shape: bf16[20,256], index: 1, kind: input, shape index: {}]
  %s2 = inlined_call_operand.vmem [shape: f32[1,256], index: 2, kind: input, shape index: {}]
  %s3 = inlined_call_operand.vmem [shape: bf16[256,10], index: 3, kind: input, shape index: {}]
  %s4 = inlined_call_operand.vmem [shape: f32[1,10], index: 4, kind: input, shape index: {}]
  %s5 = inlined_call_operand.hbm [shape: f32[8,10], index: 5, kind: output, shape index: {}]
  %s6 = sld [smem:[#allocation0]]
  $region30: #{tpu_custom_call.1} parent=0
    _
  %s8 = ssub.s32 1, %s6
  %s9 = scalar_select 0, %s8, %s6
  $region1: #{tpu_custom_call.1} parent=0
    #allocation2 [shape = 'u8[4096]{0}', space=vmem, size = 0x1000, scoped, tag = 'output window, operand 0, single buffered']
    #allocation3 [shape = 's32[1]{0}', space=sflag, size = 0x4, scoped, tag = 'scoped memory for tpu_custom_call.1']
    %10 = vsyncpa [#allocation3], 0
    // Predicated region
    $region2: #{tpu_custom_call.1} parent=1 // pred_check
      _
    $region3: #{tpu_custom_call.1} parent=1 // pred_check_branch
      %12 = sbr.rel (0) target = $region5
    $region4: #{tpu_custom_call.1} parent=1 // pred_region
      _
    $region5: #{tpu_custom_call.1} parent=1 // pred_fallthru
      _
    // Predicated region
    $region6: #{tpu_custom_call.1} parent=1 // pred_check
      _
    $region7: #{tpu_custom_call.1} parent=1 // pred_check_branch
      %14 = sbr.rel (0) target = $region9
    $region8: #{tpu_custom_call.1} parent=1 // pred_region
      _
    $region9: #{tpu_custom_call.1} parent=1 // pred_fallthru
      _
    // Predicated region
    $region10: #{tpu_custom_call.1} parent=1 // pred_check
      _
    $region11: #{tpu_custom_call.1} parent=1 // pred_check_branch
      %16 = sbr.rel (0) target = $region13
    $region12: #{tpu_custom_call.1} parent=1 // pred_region
      _
    $region13: #{tpu_custom_call.1} parent=1 // pred_fallthru
      _
    // Predicated region
    $region14: #{tpu_custom_call.1} parent=1 // pred_check
      _
    $region15: #{tpu_custom_call.1} parent=1 // pred_check_branch
      %18 = sbr.rel (0) target = $region17
    $region16: #{tpu_custom_call.1} parent=1 // pred_region
      _
    $region17: #{tpu_custom_call.1} parent=1 // pred_fallthru
      _
    // Predicated region
    $region18: #{tpu_custom_call.1} parent=1 // pred_check
      _
    $region19: #{tpu_custom_call.1} parent=1 // pred_check_branch
      %20 = sbr.rel (0) target = $region21
    $region20: #{tpu_custom_call.1} parent=1 // pred_region
      _
    $region21: #{tpu_custom_call.1} parent=1 // pred_fallthru
      _
    %v22 = vld [vmem:[%s0] sm:$0xf]
    %v23 = vld [vmem:[%s1] sm:$0xff]
    %v24 = vld [vmem:[%s1 + $0x8] sm:$0xff]
    %v25 = vld [vmem:[%s1 + $0x10] sm:$0x33]
    %v26 = vld [vmem:[%s2] sm:$0x3]
    %v28 = vperm.slane %v26, 0
    %v29 = vperm.slane %v26, 1
    %v35 = vunpack.c.l.b16 %v23
    %v36 = vunpack.c.h.b16 %v23
    %v37 = vunpack.c.l.b16 %v24
    %v38 = vunpack.c.h.b16 %v24
    %v39 = vunpack.c.l.b16 %v25
    %v40 = vunpack.c.h.b16 %v25
    %v41 = vpack.c.b16 %v37, %v35
    %v42 = vpack.c.b16 %v38, %v36
    %v43 = vpack.c.b16 %v39, %v39
    %v44 = vpack.c.b16 %v40, %v40
    %vm47 = vcmask 162816
    %v49 = vsel %vm47, %v22, 0
    %vm51 = vcmask 1041408
    %v53 = vsel %vm51, %v43, 0
    %v56 = vsel %vm51, %v44, 0
    %58 = vmatpush.bf16.msra.mxu0 0
    %59 = vmatpush.bf16.msra.mxu0 0
    %60 = vmatpush.bf16.msra.mxu0 0
    %61 = vmatpush.bf16.msra.mxu0 0
    %62 = vmatpush.bf16.msra.mxu0 0
    %63 = vmatpush.bf16.msra.mxu0 0
    %64 = vmatpush.bf16.msra.mxu0 %v53
    %65 = vmatpush.bf16.msra.mxu0 %v41
    %66 = vmatmul.bf16.gmra.mxu0 %v49
    %v67 = vpop.f32.mrf.mxu0
    %v68 = vadd.f32 %v28, %v67
    %v69 = vpop.f32.mrf.mxu0
    %70 = vdwg.mxu0
    %71 = vmatpush.bf16.msra.mxu0 0
    %72 = vmatpush.bf16.msra.mxu0 0
    %73 = vmatpush.bf16.msra.mxu0 0
    %74 = vmatpush.bf16.msra.mxu0 0
    %75 = vmatpush.bf16.msra.mxu0 0
    %76 = vmatpush.bf16.msra.mxu0 0
    %77 = vmatpush.bf16.msra.mxu0 %v56
    %78 = vmatpush.bf16.msra.mxu0 %v42
    %79 = vmatmul.bf16.gmra.mxu0 %v49
    %v80 = vpop.f32.mrf.mxu0
    %v81 = vadd.f32 %v29, %v80
    %v82 = vpop.f32.mrf.mxu0
    %83 = vdwg.mxu0
    %v84 = vmax.f32 %v68, 0.0
    %v85 = vmax.f32 %v81, 0.0
    %v86 = vpack.c.bf16 %v84, %v84
    %v87 = vpack.c.bf16 %v85, %v85
    %v88 = vld [vmem:[%s3] sm:$0xf]
    %v89 = vld [vmem:[%s3 + $0x4] sm:$0xf]
    %v90 = vld [vmem:[%s3 + $0x8] sm:$0xf]
    %v91 = vld [vmem:[%s3 + $0xc] sm:$0xf]
    %v92 = vld [vmem:[%s3 + $0x10] sm:$0xf]
    %v93 = vld [vmem:[%s3 + $0x14] sm:$0xf]
    %v94 = vld [vmem:[%s3 + $0x18] sm:$0xf]
    %v95 = vld [vmem:[%s3 + $0x1c] sm:$0xf]
    %v96 = vld [vmem:[%s3 + $0x20] sm:$0xf]
    %v97 = vld [vmem:[%s3 + $0x24] sm:$0xf]
    %v98 = vld [vmem:[%s3 + $0x28] sm:$0xf]
    %v99 = vld [vmem:[%s3 + $0x2c] sm:$0xf]
    %v100 = vld [vmem:[%s3 + $0x30] sm:$0xf]
    %v101 = vld [vmem:[%s3 + $0x34] sm:$0xf]
    %v102 = vld [vmem:[%s3 + $0x38] sm:$0xf]
    %v103 = vld [vmem:[%s3 + $0x3c] sm:$0xf]
    %v104 = vld [vmem:[%s3 + $0x40] sm:$0xf]
    %v105 = vld [vmem:[%s3 + $0x44] sm:$0xf]
    %v106 = vld [vmem:[%s3 + $0x48] sm:$0xf]
    %v107 = vld [vmem:[%s3 + $0x4c] sm:$0xf]
    %v108 = vld [vmem:[%s3 + $0x50] sm:$0xf]
    %v109 = vld [vmem:[%s3 + $0x54] sm:$0xf]
    %v110 = vld [vmem:[%s3 + $0x58] sm:$0xf]
    %v111 = vld [vmem:[%s3 + $0x5c] sm:$0xf]
    %v112 = vld [vmem:[%s3 + $0x60] sm:$0xf]
    %v113 = vld [vmem:[%s3 + $0x64] sm:$0xf]
    %v114 = vld [vmem:[%s3 + $0x68] sm:$0xf]
    %v115 = vld [vmem:[%s3 + $0x6c] sm:$0xf]
    %v116 = vld [vmem:[%s3 + $0x70] sm:$0xf]
    %v117 = vld [vmem:[%s3 + $0x74] sm:$0xf]
    %v118 = vld [vmem:[%s3 + $0x78] sm:$0xf]
    %v119 = vld [vmem:[%s3 + $0x7c] sm:$0xf]
    %v120 = vld [vmem:[%s4] sm:$0x1]
    %v122 = vperm.slane %v120, 0
    %v156 = vunpack.c.l.b16 %v88
    %v157 = vunpack.c.l.b16 %v89
    %v158 = vunpack.c.l.b16 %v90
    %v159 = vunpack.c.l.b16 %v91
    %v160 = vunpack.c.l.b16 %v92
    %v161 = vunpack.c.l.b16 %v93
    %v162 = vunpack.c.l.b16 %v94
    %v163 = vunpack.c.l.b16 %v95
    %v164 = vunpack.c.l.b16 %v96
    %v165 = vunpack.c.l.b16 %v97
    %v166 = vunpack.c.l.b16 %v98
    %v167 = vunpack.c.l.b16 %v99
    %v168 = vunpack.c.l.b16 %v100
    %v169 = vunpack.c.l.b16 %v101
    %v170 = vunpack.c.l.b16 %v102
    %v171 = vunpack.c.l.b16 %v103
    %v172 = vunpack.c.l.b16 %v104
    %v173 = vunpack.c.l.b16 %v105
    %v174 = vunpack.c.l.b16 %v106
    %v175 = vunpack.c.l.b16 %v107
    %v176 = vunpack.c.l.b16 %v108
    %v177 = vunpack.c.l.b16 %v109
    %v178 = vunpack.c.l.b16 %v110
    %v179 = vunpack.c.l.b16 %v111
    %v180 = vunpack.c.l.b16 %v112
    %v181 = vunpack.c.l.b16 %v113
    %v182 = vunpack.c.l.b16 %v114
    %v183 = vunpack.c.l.b16 %v115
    %v184 = vunpack.c.l.b16 %v116
    %v185 = vunpack.c.l.b16 %v117
    %v186 = vunpack.c.l.b16 %v118
    %v187 = vunpack.c.l.b16 %v119
    %v188 = vpack.c.b16 %v157, %v156
    %v189 = vpack.c.b16 %v159, %v158
    %v190 = vpack.c.b16 %v161, %v160
    %v191 = vpack.c.b16 %v163, %v162
    %v192 = vpack.c.b16 %v165, %v164
    %v193 = vpack.c.b16 %v167, %v166
    %v194 = vpack.c.b16 %v169, %v168
    %v195 = vpack.c.b16 %v171, %v170
    %v196 = vpack.c.b16 %v173, %v172
    %v197 = vpack.c.b16 %v175, %v174
    %v198 = vpack.c.b16 %v177, %v176
    %v199 = vpack.c.b16 %v179, %v178
    %v200 = vpack.c.b16 %v181, %v180
    %v201 = vpack.c.b16 %v183, %v182
    %v202 = vpack.c.b16 %v185, %v184
    %v203 = vpack.c.b16 %v187, %v186
    %220 = vmatpush.bf16.msra.mxu0 %v195
    %221 = vmatpush.bf16.msra.mxu0 %v194
    %222 = vmatpush.bf16.msra.mxu0 %v193
    %223 = vmatpush.bf16.msra.mxu0 %v192
    %224 = vmatpush.bf16.msra.mxu0 %v191
    %225 = vmatpush.bf16.msra.mxu0 %v190
    %226 = vmatpush.bf16.msra.mxu0 %v189
    %227 = vmatpush.bf16.msra.mxu0 %v188
    %228 = vmatmul.bf16.gmra.mxu0 %v86
    %v229 = vpop.f32.mrf.mxu0
    %v230 = vadd.f32 %v122, %v229
    %v231 = vpop.f32.mrf.mxu0
    %232 = vdwg.mxu0
    %233 = vmatpush.bf16.msra.mxu0 %v203
    %234 = vmatpush.bf16.msra.mxu0 %v202
    %235 = vmatpush.bf16.msra.mxu0 %v201
    %236 = vmatpush.bf16.msra.mxu0 %v200
    %237 = vmatpush.bf16.msra.mxu0 %v199
    %238 = vmatpush.bf16.msra.mxu0 %v198
    %239 = vmatpush.bf16.msra.mxu0 %v197
    %240 = vmatpush.bf16.msra.mxu0 %v196
    %241 = vmatmul.bf16.gmra.mxu0 %v87
    %v242 = vpop.f32.mrf.mxu0
    %v243 = vadd.f32 %v230, %v242
    %v244 = vpop.f32.mrf.mxu0
    %245 = vdwg.mxu0
    %vm246 = vcmask 80896
    %247 = vst.msk [vmem:[#allocation2] sm:$0xff] %vm246, %v243
    // Predicated region
    $region22: #{tpu_custom_call.1} parent=1 // pred_check
      _
    $region23: #{tpu_custom_call.1} parent=1 // pred_check_branch
      %249 = sbr.rel (0) target = $region25
    $region24: #{tpu_custom_call.1} parent=1 // pred_region
      %251 = vsyncadd [#allocation3], 0
      %s253 = sshll.u32 [#allocation2], 4
      %s254 = int_to_ptr.vmem [resolvable:$true] %s253
      %s255 = sshll.u32 %s5, 4
      %s256 = int_to_ptr.hbm [resolvable:$true] %s255
      %258 = dma.vmem_to_hbm [thread:$0]  %s254, 128, %s256, [#allocation3]
    $region25: #{tpu_custom_call.1} parent=1 // pred_fallthru
      _
    // Predicated region
    $region26: #{tpu_custom_call.1} parent=1 // pred_check
      _
    $region27: #{tpu_custom_call.1} parent=1 // pred_check_branch
      %260 = sbr.rel (0) target = $region29
    $region28: #{tpu_custom_call.1} parent=1 // pred_region
      %262 = dma.done [#allocation3], 128
    $region29: #{tpu_custom_call.1} parent=1 // pred_fallthru
      _
    %263 = vsyncpa [#allocation3], 1

</llo_original>
